<compile_context>
chip_gen: v7x
topology: tpu7x:2x2x1
jax: 0.10.0
libtpu: 0.0.40
codegen_flags: <defaults>
</compile_context>

<pallas_src>
import math
from functools import partial

import jax
import jax.numpy as jnp
from jax import lax
from jax.experimental import pallas as pl
from jax.experimental.pallas import tpu as pltpu


def _round_up(v, m):
    return ((v + m - 1) // m) * m


# ---------------------------------------------------------------------------
# Pass 1: global sum / sum-of-squares of x (both sums from the same tile read)
# ---------------------------------------------------------------------------
def _stats_kernel(x_ref, s1_ref, s2_ref):
    @pl.when((pl.program_id(0) == 0) & (pl.program_id(1) == 0))
    def _():
        s1_ref[...] = jnp.zeros_like(s1_ref)
        s2_ref[...] = jnp.zeros_like(s2_ref)

    xt = x_ref[...].astype(jnp.float32)
    # rank-0 partials broadcast across the lane-dense (1, 128) accumulators.
    s1_ref[...] += jnp.sum(xt)
    s2_ref[...] += jnp.sum(xt * xt)


def _global_sums(xp, tm, tk):
    Bp, Kp = xp.shape
    grid = (Bp // tm, Kp // tk)
    return pl.pallas_call(
        _stats_kernel,
        grid=grid,
        in_specs=[pl.BlockSpec((tm, tk), lambda i, j: (i, j))],
        out_specs=[pl.BlockSpec((1, 128), lambda i, j: (0, 0)),
                   pl.BlockSpec((1, 128), lambda i, j: (0, 0))],
        out_shape=[jax.ShapeDtypeStruct((1, 128), jnp.float32),
                   jax.ShapeDtypeStruct((1, 128), jnp.float32)],
        compiler_params=pltpu.CompilerParams(
            dimension_semantics=("arbitrary", "arbitrary")),
    )(xp)


# ---------------------------------------------------------------------------
# Pass 2: tiled matmul with fused scale/shift epilogue
# ---------------------------------------------------------------------------
def _make_matmul_kernel(compute_dtype):
    def kernel(scale_ref, shift_ref, x_ref, w_ref, wsum_ref, b_ref, o_ref, acc_ref):
        k = pl.program_id(2)

        @pl.when(k == 0)
        def _():
            acc_ref[...] = jnp.zeros_like(acc_ref)

        a = x_ref[...].astype(compute_dtype)   # bf16 at the MXU (f32 if requested)
        b = w_ref[...].astype(compute_dtype)
        # x @ W^T without materializing a transpose: contract the Din axis of
        # both operands ("trans-B"), f32 accumulation on the MXU.
        acc_ref[...] += lax.dot_general(
            a, b, dimension_numbers=(((1,), (1,)), ((), ())),
            preferred_element_type=jnp.float32)

        @pl.when(k == pl.num_programs(2) - 1)
        def _():
            # f32 epilogue: out = scale*(x @ W^T) + shift*rowsum(W) + bias
            out = (acc_ref[...] * scale_ref[0]
                   + wsum_ref[...] * shift_ref[0]
                   + b_ref[...])
            o_ref[...] = out.astype(o_ref.dtype)

    return kernel


@partial(jax.jit, static_argnames=("compute_dtype", "tm", "tn", "tk"))
def linear_forward(x, weight, bias, gamma, beta, wsum,
                   *, compute_dtype=jnp.bfloat16, tm=128, tn=256, tk=512):
    """Forward pass of the GSN-lab6 `Linear` module.

    x:      (B, Din) f32
    weight: (Dout, Din) torch layout, consumed as stored (no transpose)
    bias:   (Dout,)
    gamma, beta: (1,)
    wsum:   (1, Dout) = weight.sum(axis=1), precomputed once at init time
    """
    B, Din = x.shape
    Dout, _ = weight.shape
    n = B * Din

    # Tile sizes, clamped for small shapes; last dims stay multiples of 128.
    tm = min(tm, _round_up(B, 8))
    tn = min(tn, _round_up(Dout, 128))
    tk = min(tk, _round_up(Din, 128))

    Bp = _round_up(B, tm)
    Dinp = _round_up(Din, tk)
    Doutp = _round_up(Dout, tn)

    xp = x if (Bp, Dinp) == (B, Din) else jnp.pad(x, ((0, Bp - B), (0, Dinp - Din)))
    wp = weight if (Doutp, Dinp) == (Dout, Din) else jnp.pad(
        weight, ((0, Doutp - Dout), (0, Dinp - Din)))
    wsp = wsum if Doutp == Dout else jnp.pad(wsum, ((0, 0), (0, Doutp - Dout)))
    bp = bias.reshape(1, Dout)
    if Doutp != Dout:
        bp = jnp.pad(bp, ((0, 0), (0, Doutp - Dout)))

    # ---- pass 1: global scalar statistics (zero padding is exact here) ----
    s1, s2 = _global_sums(xp, tm, tk)
    mean = s1[0, 0] / n
    inv_rms = lax.rsqrt(s2[0, 0] / n)          # 1 / (||x|| / sqrt(n))
    scale_s = gamma[0] * inv_rms
    shift_s = beta[0] - mean * scale_s
    scale = scale_s.astype(jnp.float32).reshape(1)
    shift = shift_s.astype(jnp.float32).reshape(1)

    # ---- pass 2: tiled, pipelined matmul with fused epilogue ----
    grid = (Bp // tm, Doutp // tn, Dinp // tk)
    # Working-set estimate: double-buffered x/W/bias/rowsum tiles + double-
    # buffered out tile + resident f32 accumulator (all <= f32 in VMEM).
    tile_bytes = 4 * (2 * tm * tk + 2 * tn * tk + 3 * tm * tn + 4 * tn)
    vmem_limit = int(min(100 * 2**20, max(32 * 2**20, 4 * tile_bytes)))

    out = pl.pallas_call(
        _make_matmul_kernel(compute_dtype),
        grid=grid,
        in_specs=[
            pl.BlockSpec(memory_space=pltpu.SMEM),           # scale (1,)
            pl.BlockSpec(memory_space=pltpu.SMEM),           # shift (1,)
            pl.BlockSpec((tm, tk), lambda i, j, k: (i, k)),  # x tile
            pl.BlockSpec((tn, tk), lambda i, j, k: (j, k)),  # W tile (Dout, Din)
            pl.BlockSpec((1, tn), lambda i, j, k: (0, j)),   # rowsum(W)
            pl.BlockSpec((1, tn), lambda i, j, k: (0, j)),   # bias
        ],
        out_specs=pl.BlockSpec((tm, tn), lambda i, j, k: (i, j)),
        out_shape=jax.ShapeDtypeStruct((Bp, Doutp), x.dtype),
        scratch_shapes=[pltpu.VMEM((tm, tn), jnp.float32)],
        compiler_params=pltpu.CompilerParams(
            dimension_semantics=("parallel", "parallel", "arbitrary"),
            vmem_limit_bytes=vmem_limit),
    )(scale, shift, xp, wp, wsp, bp)

    return out[:B, :Dout]


if __name__ == "__main__":
    # Small shapes consistent with the module's forward: (batch, in_features)
    batch, in_features, out_features = 8, 32, 64

    key = jax.random.PRNGKey(0)
    kx, kw = jax.random.split(key)

    x = jax.random.normal(kx, (batch, in_features), dtype=jnp.float32)

    # reset_parameters(): weight ~ normal(0, 2/(out+in)), bias=0, beta=0, gamma=1
    w_std = 2.0 / (out_features + in_features)
    weight = (jax.random.normal(kw, (out_features, in_features), dtype=jnp.float32)
              * w_std)
    bias = jnp.zeros((out_features,), dtype=jnp.float32)
    beta = jnp.zeros((1,), dtype=jnp.float32)
    gamma = jnp.ones((1,), dtype=jnp.float32)

    # Precomputed once at parameter-init time (like a stored parameter).
    wsum = jnp.sum(weight, axis=1).reshape(1, out_features)

    # Pure-JAX reference (same math as the torch forward).
    m_ref = jnp.mean(x)
    std_ref = jnp.linalg.norm(x) / math.sqrt(x.size)
    r_ref = (x - m_ref) / std_ref * gamma[0] + beta[0]
    ref = r_ref @ weight.T + bias

    # Exact path (f32 MXU operands) -- tight tolerance.
    out_f32 = linear_forward(x, weight, bias, gamma, beta, wsum,
                             compute_dtype=jnp.float32)
    out_f32 = jax.block_until_ready(out_f32)
    assert out_f32.shape == (batch, out_features)
    assert jnp.allclose(out_f32, ref, atol=1e-4, rtol=1e-4)

    # Fast path (bf16 MXU operands, f32 accumulation & reductions).
    out_bf16 = linear_forward(x, weight, bias, gamma, beta, wsum)
    out_bf16 = jax.block_until_ready(out_bf16)
    assert out_bf16.shape == (batch, out_features)
    assert jnp.allclose(out_bf16, ref, atol=3e-2, rtol=3e-2)

    print("KERNEL_OK")
</pallas_src>

<mosaic_0001>
module attributes {stable_mosaic.version = 11 : i64} {
  func.func @_stats_kernel(%arg0: i32, %arg1: i32, %arg2: memref<8x128xf32, #tpu.memory_space<vmem>>, %arg3: memref<1x128xf32, #tpu.memory_space<vmem>>, %arg4: memref<1x128xf32, #tpu.memory_space<vmem>>) attributes {dimension_semantics = [#tpu.dimension_semantics<arbitrary>, #tpu.dimension_semantics<arbitrary>], iteration_bounds = array<i64: 1, 1>, scalar_prefetch = 0 : i64, scratch_operands = 0 : i64, tpu.core_type = #tpu.core_type<tc>, window_params = [{transform_indices = @transform_0, window_bounds = array<i64: 8, 128>}, {pipeline_mode = #tpu.pipeline_mode<synchronous>, transform_indices = @transform_1, window_bounds = array<i64: 1, 128>}, {pipeline_mode = #tpu.pipeline_mode<synchronous>, transform_indices = @transform_2, window_bounds = array<i64: 1, 128>}]} {
    %c0_i32 = arith.constant 0 : i32
    %0 = arith.cmpi eq, %arg0, %c0_i32 : i32
    %c0_i32_0 = arith.constant 0 : i32
    %1 = arith.cmpi eq, %arg1, %c0_i32_0 : i32
    %2 = arith.andi %0, %1 : i1
    %3 = arith.extui %2 : i1 to i32
    %c0_i32_1 = arith.constant 0 : i32
    %4 = arith.cmpi ne, %3, %c0_i32_1 : i32
    scf.if %4 {
      %cst_12 = arith.constant 0.000000e+00 : f32
      %23 = vector.broadcast %cst_12 : f32 to vector<1x128xf32>
      %c0_13 = arith.constant 0 : index
      %c0_14 = arith.constant 0 : index
      %24 = vector.load %arg3[%c0_13, %c0_14] : memref<1x128xf32, #tpu.memory_space<vmem>>, vector<1x128xf32>
      tpu.vector_store %arg3[%c0_13, %c0_14], %23 {strides = array<i32>} : memref<1x128xf32, #tpu.memory_space<vmem>>, vector<1x128xf32>,
      %cst_15 = arith.constant 0.000000e+00 : f32
      %25 = vector.broadcast %cst_15 : f32 to vector<1x128xf32>
      %c0_16 = arith.constant 0 : index
      %c0_17 = arith.constant 0 : index
      %26 = vector.load %arg4[%c0_16, %c0_17] : memref<1x128xf32, #tpu.memory_space<vmem>>, vector<1x128xf32>
      tpu.vector_store %arg4[%c0_16, %c0_17], %25 {strides = array<i32>} : memref<1x128xf32, #tpu.memory_space<vmem>>, vector<1x128xf32>,
    } else {
    }
    %c0 = arith.constant 0 : index
    %c0_2 = arith.constant 0 : index
    %5 = vector.load %arg2[%c0, %c0_2] : memref<8x128xf32, #tpu.memory_space<vmem>>, vector<8x128xf32>
    %c0_3 = arith.constant 0 : index
    %c0_4 = arith.constant 0 : index
    %6 = vector.load %arg3[%c0_3, %c0_4] : memref<1x128xf32, #tpu.memory_space<vmem>>, vector<1x128xf32>
    %7 = vector.shape_cast %5 : vector<8x128xf32> to vector<1x8x128xf32>
    %cst = arith.constant dense<0.000000e+00> : vector<1xf32>
    %8 = vector.multi_reduction <add>, %7, %cst [1, 2] : vector<1x8x128xf32> to vector<1xf32>
    %9 = vector.shape_cast %8 : vector<1xf32> to vector<1x1x1xf32>
    %10 = vector.extract %9[0, 0, 0] : f32 from vector<1x1x1xf32>
    %11 = vector.broadcast %10 : f32 to vector<1x128xf32>
    %12 = arith.addf %6, %11 : vector<1x128xf32>
    %c0_5 = arith.constant 0 : index
    %c0_6 = arith.constant 0 : index
    %13 = vector.load %arg3[%c0_5, %c0_6] : memref<1x128xf32, #tpu.memory_space<vmem>>, vector<1x128xf32>
    tpu.vector_store %arg3[%c0_5, %c0_6], %12 {strides = array<i32>} : memref<1x128xf32, #tpu.memory_space<vmem>>, vector<1x128xf32>,
    %c0_7 = arith.constant 0 : index
    %c0_8 = arith.constant 0 : index
    %14 = vector.load %arg4[%c0_7, %c0_8] : memref<1x128xf32, #tpu.memory_space<vmem>>, vector<1x128xf32>
    %15 = arith.mulf %5, %5 : vector<8x128xf32>
    %16 = vector.shape_cast %15 : vector<8x128xf32> to vector<1x8x128xf32>
    %cst_9 = arith.constant dense<0.000000e+00> : vector<1xf32>
    %17 = vector.multi_reduction <add>, %16, %cst_9 [1, 2] : vector<1x8x128xf32> to vector<1xf32>
    %18 = vector.shape_cast %17 : vector<1xf32> to vector<1x1x1xf32>
    %19 = vector.extract %18[0, 0, 0] : f32 from vector<1x1x1xf32>
    %20 = vector.broadcast %19 : f32 to vector<1x128xf32>
    %21 = arith.addf %14, %20 : vector<1x128xf32>
    %c0_10 = arith.constant 0 : index
    %c0_11 = arith.constant 0 : index
    %22 = vector.load %arg4[%c0_10, %c0_11] : memref<1x128xf32, #tpu.memory_space<vmem>>, vector<1x128xf32>
    tpu.vector_store %arg4[%c0_10, %c0_11], %21 {strides = array<i32>} : memref<1x128xf32, #tpu.memory_space<vmem>>, vector<1x128xf32>,
    return
  }
  func.func @transform_0(%arg0: i32, %arg1: i32) -> (i32, i32) {
    %c0_i32 = arith.constant 0 : i32
    return %arg0, %arg1 : i32, i32
  }
  func.func @transform_1(%arg0: i32, %arg1: i32) -> (i32, i32) {
    %c0_i32 = arith.constant 0 : i32
    %c0_i32_0 = arith.constant 0 : i32
    %c0_i32_1 = arith.constant 0 : i32
    return %c0_i32, %c0_i32_0 : i32, i32
  }
  func.func @transform_2(%arg0: i32, %arg1: i32) -> (i32, i32) {
    %c0_i32 = arith.constant 0 : i32
    %c0_i32_0 = arith.constant 0 : i32
    %c0_i32_1 = arith.constant 0 : i32
    return %c0_i32, %c0_i32_0 : i32, i32
  }
}

module attributes {stable_mosaic.version = 11 : i64} {
  func.func @kernel(%arg0: i32, %arg1: i32, %arg2: i32, %arg3: memref<1xf32, #tpu.memory_space<smem>>, %arg4: memref<1xf32, #tpu.memory_space<smem>>, %arg5: memref<8x128xf32, #tpu.memory_space<vmem>>, %arg6: memref<128x128xf32, #tpu.memory_space<vmem>>, %arg7: memref<1x128xf32, #tpu.memory_space<vmem>>, %arg8: memref<1x128xf32, #tpu.memory_space<vmem>>, %arg9: memref<8x128xf32, #tpu.memory_space<vmem>>, %arg10: memref<8x128xf32, #tpu.memory_space<vmem>>) attributes {dimension_semantics = [#tpu.dimension_semantics<parallel>, #tpu.dimension_semantics<parallel>, #tpu.dimension_semantics<arbitrary>], iteration_bounds = array<i64: 1, 1, 1>, scalar_prefetch = 0 : i64, scratch_operands = 1 : i64, tpu.core_type = #tpu.core_type<tc>, window_params = [{transform_indices = @transform_0, window_bounds = array<i64: 1>}, {transform_indices = @transform_1, window_bounds = array<i64: 1>}, {transform_indices = @transform_2, window_bounds = array<i64: 8, 128>}, {transform_indices = @transform_3, window_bounds = array<i64: 128, 128>}, {transform_indices = @transform_4, window_bounds = array<i64: 1, 128>}, {transform_indices = @transform_5, window_bounds = array<i64: 1, 128>}, {transform_indices = @transform_6, window_bounds = array<i64: 8, 128>}]} {
    %c0_i32 = arith.constant 0 : i32
    %0 = arith.cmpi eq, %arg2, %c0_i32 : i32
    %1 = arith.extui %0 : i1 to i32
    %c0_i32_0 = arith.constant 0 : i32
    %2 = arith.cmpi ne, %1, %c0_i32_0 : i32
    scf.if %2 {
      %cst_10 = arith.constant 0.000000e+00 : f32
      %12 = vector.broadcast %cst_10 : f32 to vector<8x128xf32>
      %c0_11 = arith.constant 0 : index
      %c0_12 = arith.constant 0 : index
      %13 = vector.load %arg10[%c0_11, %c0_12] : memref<8x128xf32, #tpu.memory_space<vmem>>, vector<8x128xf32>
      tpu.vector_store %arg10[%c0_11, %c0_12], %12 {strides = array<i32>} : memref<8x128xf32, #tpu.memory_space<vmem>>, vector<8x128xf32>,
    } else {
    }
    %c0 = arith.constant 0 : index
    %c0_1 = arith.constant 0 : index
    %3 = vector.load %arg5[%c0, %c0_1] : memref<8x128xf32, #tpu.memory_space<vmem>>, vector<8x128xf32>
    %c0_2 = arith.constant 0 : index
    %c0_3 = arith.constant 0 : index
    %4 = vector.load %arg6[%c0_2, %c0_3] : memref<128x128xf32, #tpu.memory_space<vmem>>, vector<128x128xf32>
    %c0_4 = arith.constant 0 : index
    %c0_5 = arith.constant 0 : index
    %5 = vector.load %arg10[%c0_4, %c0_5] : memref<8x128xf32, #tpu.memory_space<vmem>>, vector<8x128xf32>
    %cst = arith.constant dense<0.000000e+00> : vector<8x128xf32>
    %6 = tpu.matmul %3, %4, %cst {dimension_numbers = #tpu.dot_dimension_numbers<[1], [1], [0], [0], [0, 0, 1, 0], [], []>} : vector<8x128xf32>, vector<128x128xf32>, vector<8x128xf32> -> vector<8x128xf32>
    %7 = arith.addf %5, %6 : vector<8x128xf32>
    %c0_6 = arith.constant 0 : index
    %c0_7 = arith.constant 0 : index
    %8 = vector.load %arg10[%c0_6, %c0_7] : memref<8x128xf32, #tpu.memory_space<vmem>>, vector<8x128xf32>
    tpu.vector_store %arg10[%c0_6, %c0_7], %7 {strides = array<i32>} : memref<8x128xf32, #tpu.memory_space<vmem>>, vector<8x128xf32>,
    %c0_i32_8 = arith.constant 0 : i32
    %9 = arith.cmpi eq, %arg2, %c0_i32_8 : i32
    %10 = arith.extui %9 : i1 to i32
    %c0_i32_9 = arith.constant 0 : i32
    %11 = arith.cmpi ne, %10, %c0_i32_9 : i32
    scf.if %11 {
      %c0_10 = arith.constant 0 : index
      %c0_11 = arith.constant 0 : index
      %12 = vector.load %arg10[%c0_10, %c0_11] : memref<8x128xf32, #tpu.memory_space<vmem>>, vector<8x128xf32>
      %c0_12 = arith.constant 0 : index
      %13 = memref.load %arg3[%c0_12] : memref<1xf32, #tpu.memory_space<smem>>
      %14 = vector.broadcast %13 : f32 to vector<8x128xf32>
      %15 = arith.mulf %12, %14 : vector<8x128xf32>
      %c0_13 = arith.constant 0 : index
      %c0_14 = arith.constant 0 : index
      %16 = vector.load %arg7[%c0_13, %c0_14] : memref<1x128xf32, #tpu.memory_space<vmem>>, vector<1x128xf32>
      %c0_15 = arith.constant 0 : index
      %17 = memref.load %arg4[%c0_15] : memref<1xf32, #tpu.memory_space<smem>>
      %18 = vector.broadcast %17 : f32 to vector<1x128xf32>
      %19 = arith.mulf %16, %18 : vector<1x128xf32>
      %20 = vector.broadcast %19 : vector<1x128xf32> to vector<8x128xf32>
      %21 = arith.addf %15, %20 : vector<8x128xf32>
      %c0_16 = arith.constant 0 : index
      %c0_17 = arith.constant 0 : index
      %22 = vector.load %arg8[%c0_16, %c0_17] : memref<1x128xf32, #tpu.memory_space<vmem>>, vector<1x128xf32>
      %23 = vector.broadcast %22 : vector<1x128xf32> to vector<8x128xf32>
      %24 = arith.addf %21, %23 : vector<8x128xf32>
      %c0_18 = arith.constant 0 : index
      %c0_19 = arith.constant 0 : index
      %25 = vector.load %arg9[%c0_18, %c0_19] : memref<8x128xf32, #tpu.memory_space<vmem>>, vector<8x128xf32>
      tpu.vector_store %arg9[%c0_18, %c0_19], %24 {strides = array<i32>} : memref<8x128xf32, #tpu.memory_space<vmem>>, vector<8x128xf32>,
    } else {
    }
    return
  }
  func.func @transform_0(%arg0: i32, %arg1: i32, %arg2: i32) -> i32 {
    %c0_i32 = arith.constant 0 : i32
    %c0_i32_0 = arith.constant 0 : i32
    return %c0_i32 : i32
  }
  func.func @transform_1(%arg0: i32, %arg1: i32, %arg2: i32) -> i32 {
    %c0_i32 = arith.constant 0 : i32
    %c0_i32_0 = arith.constant 0 : i32
    return %c0_i32 : i32
  }
  func.func @transform_2(%arg0: i32, %arg1: i32, %arg2: i32) -> (i32, i32) {
    %c0_i32 = arith.constant 0 : i32
    return %arg0, %arg2 : i32, i32
  }
  func.func @transform_3(%arg0: i32, %arg1: i32, %arg2: i32) -> (i32, i32) {
    %c0_i32 = arith.constant 0 : i32
    return %arg1, %arg2 : i32, i32
  }
  func.func @transform_4(%arg0: i32, %arg1: i32, %arg2: i32) -> (i32, i32) {
    %c0_i32 = arith.constant 0 : i32
    %c0_i32_0 = arith.constant 0 : i32
    return %c0_i32, %arg1 : i32, i32
  }
  func.func @transform_5(%arg0: i32, %arg1: i32, %arg2: i32) -> (i32, i32) {
    %c0_i32 = arith.constant 0 : i32
    %c0_i32_0 = arith.constant 0 : i32
    return %c0_i32, %arg1 : i32, i32
  }
  func.func @transform_6(%arg0: i32, %arg1: i32, %arg2: i32) -> (i32, i32) {
    %c0_i32 = arith.constant 0 : i32
    return %arg0, %arg1 : i32, i32
  }
}

</mosaic_0001>

<llo_original>
// kernel: linear_forward.2
$region0: #{linear_forward.2}
  #allocation0 [shape = 'u32[]', space=smem, size = 0x4, offset = 0x4, fixed_abs, tag = 'smem constant byte address 0x4 - core index']
  #allocation1 [shape = 'u32[144,128]{1,0:T(1,128)}', space=vmem, size = 0x12000, scoped, tag = 'internal scratch']
  %s0 = inlined_call_operand.vmem [shape: f32[8,128], index: 0, kind: input, shape index: {}]
  %s1 = inlined_call_operand.vmem [shape: f32[1,128], index: 1, kind: output, shape index: {0}]
  %s2 = inlined_call_operand.vmem [shape: f32[1,128], index: 2, kind: output, shape index: {1}]
  %3 = xla_tuple %s1, %s2
  %s4 = sld [smem:[#allocation0]]
  $region26: #{linear_forward.2} parent=0
    _
  %s6 = ssub.s32 1, %s4
  %s7 = scalar_select 0, %s6, %s4
  // Predicated region
  $region2: #{linear_forward.2} parent=0 // pred_check
    _
  $region3: #{linear_forward.2} parent=0 // pred_check_branch
    %9 = sbr.rel (0) target = $region5
  $region4: #{linear_forward.2} parent=0 // pred_region
    _
  $region5: #{linear_forward.2} parent=0 // pred_fallthru
    _
  %p10 = scmp.eq.s32.totalorder 0, 0
  %p11 = scmp.eq.s32.totalorder 0, 0
  %p12 = pnand %p10, %p11
  %p13 = pneg %p12
  // Predicated region
  $region6: #{linear_forward.2} parent=0 // pred_check
    _
  $region7: #{linear_forward.2} parent=0 // pred_check_branch
    %15 = sbr.rel (%p12) target = $region9
  $region8: #{linear_forward.2} parent=0 // pred_region
    %16 = vst [vmem:[%s1] sm:$0x1] 0.0
    %17 = vst [vmem:[%s2] sm:$0x1] 0.0
  $region9: #{linear_forward.2} parent=0 // pred_fallthru
    _
  %v18 = vld [vmem:[%s0] sm:$0xff]
  %v19 = vld [vmem:[%s1] sm:$0x1]
  %20 = vadd.xlane.f32.xlu0 %v18
  %v21 = vpop.xlane.xlu0 %20
  %v22 = vrot.slane %v21, 4
  %v23 = vadd.f32 %v21, %v22
  %v24 = vrot.slane %v23, 2
  %v25 = vadd.f32 %v23, %v24
  %v26 = vrot.slane %v25, 1
  %v27 = vadd.f32 %v25, %v26
  %s28 = vtos %v27
  %v29 = vstv %s28
  %v30 = vadd.f32 %v19, %v29
  %31 = vst [vmem:[%s1] sm:$0x1] %v30
  %v32 = vld [vmem:[%s2] sm:$0x1]
  %v33 = vmul.f32 %v18, %v18
  %34 = vadd.xlane.f32.xlu0 %v33
  %v35 = vpop.xlane.xlu0 %34
  %v36 = vrot.slane %v35, 4
  %v37 = vadd.f32 %v35, %v36
  %v38 = vrot.slane %v37, 2
  %v39 = vadd.f32 %v37, %v38
  %v40 = vrot.slane %v39, 1
  %v41 = vadd.f32 %v39, %v40
  %s42 = vtos %v41
  %v43 = vstv %s42
  %v44 = vadd.f32 %v32, %v43
  %45 = vst [vmem:[%s2] sm:$0x1] %v44
  // Predicated region
  $region10: #{linear_forward.2} parent=0 // pred_check
    _
  $region11: #{linear_forward.2} parent=0 // pred_check_branch
    %47 = sbr.rel (0) target = $region13
  $region12: #{linear_forward.2} parent=0 // pred_region
    _
  $region13: #{linear_forward.2} parent=0 // pred_fallthru
    _
  // Predicated region
  $region14: #{linear_forward.2} parent=0 // pred_check
    _
  $region15: #{linear_forward.2} parent=0 // pred_check_branch
    %49 = sbr.rel (0) target = $region17
  $region16: #{linear_forward.2} parent=0 // pred_region
    _
  $region17: #{linear_forward.2} parent=0 // pred_fallthru
    _
  // Predicated region
  $region18: #{linear_forward.2} parent=0 // pred_check
    _
  $region19: #{linear_forward.2} parent=0 // pred_check_branch
    %51 = sbr.rel (0) target = $region21
  $region20: #{linear_forward.2} parent=0 // pred_region
    _
  $region21: #{linear_forward.2} parent=0 // pred_fallthru
    _
  // Predicated region
  $region22: #{linear_forward.2} parent=0 // pred_check
    _
  $region23: #{linear_forward.2} parent=0 // pred_check_branch
    %53 = sbr.rel (0) target = $region25
  $region24: #{linear_forward.2} parent=0 // pred_region
    _
  $region25: #{linear_forward.2} parent=0 // pred_fallthru
    _

// kernel: linear_forward.3
$region0: #{linear_forward.3}
  #allocation0 [shape = 'u32[]', space=smem, size = 0x4, offset = 0x4, fixed_abs, tag = 'smem constant byte address 0x4 - core index']
  #allocation1 [shape = 'u32[144,128]{1,0:T(1,128)}', space=vmem, size = 0x12000, scoped, tag = 'internal scratch']
  #allocation2 [shape = 'f32[8,128]{1,0:T(8,128)}', space=vmem, size = 0x1000, scoped, tag = 'scratch operand']
  #allocation3 [shape = 'f32[1]{0:T(128)S(6)}', space=smem, size = 0x200, scoped, tag = 'scoped memory for linear_forward.3']
  #allocation4 [shape = 'f32[1]{0:T(128)S(6)}', space=smem, size = 0x200, scoped, tag = 'scoped memory for linear_forward.3']
  %s0 = inlined_call_operand.<no memory space> [shape: f32[1], index: 0, kind: input, shape index: {}]
  %s1 = inlined_call_operand.<no memory space> [shape: f32[1], index: 1, kind: input, shape index: {}]
  %s2 = inlined_call_operand.vmem [shape: f32[8,128], index: 2, kind: input, shape index: {}]
  %s3 = inlined_call_operand.vmem [shape: f32[128,128], index: 3, kind: input, shape index: {}]
  %s4 = inlined_call_operand.vmem [shape: f32[1,128], index: 4, kind: input, shape index: {}]
  %s5 = inlined_call_operand.vmem [shape: f32[1,128], index: 5, kind: input, shape index: {}]
  %s6 = inlined_call_operand.hbm [shape: f32[8,128], index: 6, kind: output, shape index: {}]
  %s7 = sld [smem:[#allocation0]]
  $region42: #{linear_forward.3} parent=0
    _
  %s9 = ssub.s32 1, %s7
  %s10 = scalar_select 0, %s9, %s7
  %11 = sst [smem:[#allocation3]] %s0
  %12 = sst [smem:[#allocation4]] %s1
  $region1: #{linear_forward.3} parent=0
    #allocation5 [shape = 'u8[4096]{0}', space=vmem, size = 0x1000, scoped, tag = 'output window, operand 0, single buffered']
    #allocation6 [shape = 's32[1]{0}', space=sflag, size = 0x4, scoped, tag = 'scoped memory for linear_forward.3']
    %13 = vsyncpa [#allocation6], 0
    // Predicated region
    $region2: #{linear_forward.3} parent=1 // pred_check
      _
    $region3: #{linear_forward.3} parent=1 // pred_check_branch
      %15 = sbr.rel (0) target = $region5
    $region4: #{linear_forward.3} parent=1 // pred_region
      _
    $region5: #{linear_forward.3} parent=1 // pred_fallthru
      _
    // Predicated region
    $region6: #{linear_forward.3} parent=1 // pred_check
      _
    $region7: #{linear_forward.3} parent=1 // pred_check_branch
      %17 = sbr.rel (0) target = $region9
    $region8: #{linear_forward.3} parent=1 // pred_region
      _
    $region9: #{linear_forward.3} parent=1 // pred_fallthru
      _
    // Predicated region
    $region10: #{linear_forward.3} parent=1 // pred_check
      _
    $region11: #{linear_forward.3} parent=1 // pred_check_branch
      %19 = sbr.rel (0) target = $region13
    $region12: #{linear_forward.3} parent=1 // pred_region
      _
    $region13: #{linear_forward.3} parent=1 // pred_fallthru
      _
    // Predicated region
    $region14: #{linear_forward.3} parent=1 // pred_check
      _
    $region15: #{linear_forward.3} parent=1 // pred_check_branch
      %21 = sbr.rel (0) target = $region17
    $region16: #{linear_forward.3} parent=1 // pred_region
      _
    $region17: #{linear_forward.3} parent=1 // pred_fallthru
      _
    // Predicated region
    $region18: #{linear_forward.3} parent=1 // pred_check
      _
    $region19: #{linear_forward.3} parent=1 // pred_check_branch
      %23 = sbr.rel (0) target = $region21
    $region20: #{linear_forward.3} parent=1 // pred_region
      _
    $region21: #{linear_forward.3} parent=1 // pred_fallthru
      _
    // Predicated region
    $region22: #{linear_forward.3} parent=1 // pred_check
      _
    $region23: #{linear_forward.3} parent=1 // pred_check_branch
      %25 = sbr.rel (0) target = $region25
    $region24: #{linear_forward.3} parent=1 // pred_region
      _
    $region25: #{linear_forward.3} parent=1 // pred_fallthru
      _
    %p26 = scmp.eq.s32.totalorder 0, 0
    // Predicated region
    $region26: #{linear_forward.3} parent=1 // pred_check
      %p27 = pneg %p26
    $region27: #{linear_forward.3} parent=1 // pred_check_branch
      %29 = sbr.rel (%p27) target = $region29
    $region28: #{linear_forward.3} parent=1 // pred_region
      %30 = vst [vmem:[#allocation2] sm:$0xff] 0.0
    $region29: #{linear_forward.3} parent=1 // pred_fallthru
      _
    %v31 = vld [vmem:[%s2] sm:$0xff]
    %v32 = vld [vmem:[%s3] sm:$0xff]
    %v33 = vld [vmem:[%s3 + $0x8] sm:$0xff]
    %v34 = vld [vmem:[%s3 + $0x10] sm:$0xff]
    %v35 = vld [vmem:[%s3 + $0x18] sm:$0xff]
    %v36 = vld [vmem:[%s3 + $0x20] sm:$0xff]
    %v37 = vld [vmem:[%s3 + $0x28] sm:$0xff]
    %v38 = vld [vmem:[%s3 + $0x30] sm:$0xff]
    %v39 = vld [vmem:[%s3 + $0x38] sm:$0xff]
    %v40 = vld [vmem:[%s3 + $0x40] sm:$0xff]
    %v41 = vld [vmem:[%s3 + $0x48] sm:$0xff]
    %v42 = vld [vmem:[%s3 + $0x50] sm:$0xff]
    %v43 = vld [vmem:[%s3 + $0x58] sm:$0xff]
    %v44 = vld [vmem:[%s3 + $0x60] sm:$0xff]
    %v45 = vld [vmem:[%s3 + $0x68] sm:$0xff]
    %v46 = vld [vmem:[%s3 + $0x70] sm:$0xff]
    %v47 = vld [vmem:[%s3 + $0x78] sm:$0xff]
    %v48 = vld [vmem:[#allocation2] sm:$0xff]
    %49 = vmatprep.subr.mxu0 0.0
    %50 = vmatpush1.xpose.msra.mxu0 %v32
    %51 = vmatprep.subr.mxu0 0.0
    %52 = vmatpush1.xpose.msra.mxu0 %v33
    %53 = vmatprep.subr.mxu0 0.0
    %54 = vmatpush1.xpose.msra.mxu0 %v34
    %55 = vmatprep.subr.mxu0 0.0
    %56 = vmatpush1.xpose.msra.mxu0 %v35
    %57 = vmatprep.subr.mxu0 0.0
    %58 = vmatpush1.xpose.msra.mxu0 %v36
    %59 = vmatprep.subr.mxu0 0.0
    %60 = vmatpush1.xpose.msra.mxu0 %v37
    %61 = vmatprep.subr.mxu0 0.0
    %62 = vmatpush1.xpose.msra.mxu0 %v38
    %63 = vmatprep.subr.mxu0 0.0
    %64 = vmatpush1.xpose.msra.mxu0 %v39
    %65 = vmatprep.subr.mxu0 0.0
    %66 = vmatpush1.xpose.msra.mxu0 %v40
    %67 = vmatprep.subr.mxu0 0.0
    %68 = vmatpush1.xpose.msra.mxu0 %v41
    %69 = vmatprep.subr.mxu0 0.0
    %70 = vmatpush1.xpose.msra.mxu0 %v42
    %71 = vmatprep.subr.mxu0 0.0
    %72 = vmatpush1.xpose.msra.mxu0 %v43
    %73 = vmatprep.subr.mxu0 0.0
    %74 = vmatpush1.xpose.msra.mxu0 %v44
    %75 = vmatprep.subr.mxu0 0.0
    %76 = vmatpush1.xpose.msra.mxu0 %v45
    %77 = vmatprep.subr.mxu0 0.0
    %78 = vmatpush1.xpose.msra.mxu0 %v46
    %79 = vmatprep.subr.mxu0 0.0
    %80 = vmatpush1.xpose.msra.mxu0 %v47
    %81 = vmatprep.subr.mxu0 0.0
    %82 = vmatpush1.xpose.msra.mxu0 0.0
    %83 = vmatprep.subr.mxu0 0.0
    %84 = vmatpush1.xpose.msra.mxu0 0.0
    %85 = vmatprep.subr.mxu0 0.0
    %86 = vmatpush1.xpose.msra.mxu0 0.0
    %87 = vmatprep.subr.mxu0 0.0
    %88 = vmatpush1.xpose.msra.mxu0 0.0
    %89 = vmatprep.subr.mxu0 0.0
    %90 = vmatpush1.xpose.msra.mxu0 0.0
    %91 = vmatprep.subr.mxu0 0.0
    %92 = vmatpush1.xpose.msra.mxu0 0.0
    %93 = vmatprep.subr.mxu0 0.0
    %94 = vmatpush1.xpose.msra.mxu0 0.0
    %95 = vmatprep.subr.mxu0 0.0
    %96 = vmatpush1.xpose.msra.mxu0 0.0
    %97 = vmatprep.subr.mxu0 0.0
    %98 = vmatpush1.xpose.msra.mxu0 0.0
    %99 = vmatprep.subr.mxu0 0.0
    %100 = vmatpush1.xpose.msra.mxu0 0.0
    %101 = vmatprep.subr.mxu0 0.0
    %102 = vmatpush1.xpose.msra.mxu0 0.0
    %103 = vmatprep.subr.mxu0 0.0
    %104 = vmatpush1.xpose.msra.mxu0 0.0
    %105 = vmatprep.subr.mxu0 0.0
    %106 = vmatpush1.xpose.msra.mxu0 0.0
    %107 = vmatprep.subr.mxu0 0.0
    %108 = vmatpush1.xpose.msra.mxu0 0.0
    %109 = vmatprep.subr.mxu0 0.0
    %110 = vmatpush1.xpose.msra.mxu0 0.0
    %111 = vmatprep.subr.mxu0 0.0
    %112 = vmatpush1.xpose.msra.mxu0 0.0
    %113 = vmatprep.mubr.f32.mxu0 0.0
    %114 = vmatmul.mubr.f32.gmra.mrb[0].mxu0 %v31
    %v115 = vpop.f32.mrb[0].mxu0
    %v116 = vadd.f32 0.0, %v115
    %v117 = vpop.f32.mrb[0].mxu0
    %118 = vdwg.mxu0
    %v119 = vadd.f32 %v48, %v116
    %120 = vst [vmem:[#allocation2] sm:$0xff] %v119
    // Predicated region
    $region30: #{linear_forward.3} parent=1 // pred_check
      %p121 = pneg %p26
    $region31: #{linear_forward.3} parent=1 // pred_check_branch
      %123 = sbr.rel (%p121) target = $region33
    $region32: #{linear_forward.3} parent=1 // pred_region
      %v124 = vld [vmem:[#allocation2] sm:$0xff]
      %s125 = sld [smem:[#allocation3]]
      %v126 = vstv %s125
      %v127 = vmul.f32 %v124, %v126
      %v128 = vld [vmem:[%s4] sm:$0x1]
      %s129 = sld [smem:[#allocation4]]
      %v130 = vstv %s129
      %v131 = vmul.f32 %v128, %v130
      %v133 = vlaneseq
      %v134 = vshrl.u32 %v133, 7
      %v135 = vsub.s32 0, %v134
      %v136 = vrot.slane %v131, %v135
      %v138 = vadd.f32 %v127, %v136
      %v139 = vld [vmem:[%s5] sm:$0x1]
      %v141 = vlaneseq
      %v142 = vshrl.u32 %v141, 7
      %v143 = vsub.s32 0, %v142
      %v144 = vrot.slane %v139, %v143
      %v146 = vadd.f32 %v138, %v144
      %147 = vst [vmem:[#allocation5] sm:$0xff] %v146
    $region33: #{linear_forward.3} parent=1 // pred_fallthru
      _
    // Predicated region
    $region34: #{linear_forward.3} parent=1 // pred_check
      _
    $region35: #{linear_forward.3} parent=1 // pred_check_branch
      %149 = sbr.rel (0) target = $region37
    $region36: #{linear_forward.3} parent=1 // pred_region
      %s151 = ssub.s32 128, 128
      %152 = vsyncadd [#allocation6], %s151
      %s154 = sshll.u32 [#allocation5], 4
      %s155 = int_to_ptr.vmem [resolvable:$true] %s154
      %157 = dma.vmem_to_hbm [thread:$0]  %s155, 128, %s6, [#allocation6]
    $region37: #{linear_forward.3} parent=1 // pred_fallthru
      _
    // Predicated region
    $region38: #{linear_forward.3} parent=1 // pred_check
      _
    $region39: #{linear_forward.3} parent=1 // pred_check_branch
      %159 = sbr.rel (0) target = $region41
    $region40: #{linear_forward.3} parent=1 // pred_region
      %160 = dma.done [#allocation6], 128
    $region41: #{linear_forward.3} parent=1 // pred_fallthru
      _
    %161 = vsyncpa [#allocation6], 1

</llo_original>
